<compile_context>
chip_gen: v5e
topology: v5e:2x2
jax: 0.10.0
libtpu: 0.0.40
codegen_flags: <defaults>
</compile_context>

<pallas_src>
import jax
import jax.numpy as jnp
from jax.experimental import pallas as pl
from jax.experimental.pallas import tpu as pltpu

IN_DIM = 128
HIDDEN = 500
HIDDEN_PAD = 512  # lane-/MXU-aligned hidden width (zero-padded)


def _leaky_relu(x, negative_slope=0.2):
    # Matches torch.nn.functional.leaky_relu(x, 0.2)
    return jnp.where(x >= 0, x, negative_slope * x)


def _mlp_kernel(x_ref, w1_ref, b1_ref, w2_ref, b2_ref, w3_ref, b3_ref, o_ref):
    # bf16 MXU matmuls with f32 accumulation; all elementwise math in f32.
    x = x_ref[...].astype(jnp.bfloat16)

    h1 = jnp.dot(x, w1_ref[...], preferred_element_type=jnp.float32) + b1_ref[...]
    h1 = _leaky_relu(h1)

    h2 = jnp.dot(h1.astype(jnp.bfloat16), w2_ref[...],
                 preferred_element_type=jnp.float32) + b2_ref[...]
    h2 = _leaky_relu(h2)

    h3 = jnp.dot(h2.astype(jnp.bfloat16), w3_ref[...],
                 preferred_element_type=jnp.float32) + b3_ref[...]
    # TODO(synk): if batch grows very large, pad out_dim to 128 for a lane-dense
    # (unmasked) output store and slice in the wrapper.
    o_ref[...] = jax.nn.sigmoid(h3)


def prepare_params(params, hidden_pad=HIDDEN_PAD):
    """One-time prep: zero-pad hidden 500->512 and cast matmul weights to bf16."""
    w1, b1, w2, b2, w3, b3 = params
    hidden = w1.shape[1]
    p = hidden_pad - hidden
    assert p >= 0
    w1p = jnp.pad(w1, ((0, 0), (0, p))).astype(jnp.bfloat16)
    b1p = jnp.pad(b1, ((0, 0), (0, p))).astype(jnp.float32)
    w2p = jnp.pad(w2, ((0, p), (0, p))).astype(jnp.bfloat16)
    b2p = jnp.pad(b2, ((0, 0), (0, p))).astype(jnp.float32)
    w3p = jnp.pad(w3, ((0, p), (0, 0))).astype(jnp.bfloat16)
    b3p = b3.astype(jnp.float32)
    return (w1p, b1p, w2p, b2p, w3p, b3p)


def discriminator_forward(x, padded_params, *, tile_m=256):
    """x: [B, 128] f32. padded_params from prepare_params(). Returns [B, out_dim] f32."""
    w1, b1, w2, b2, w3, b3 = padded_params
    B, in_dim = x.shape
    out_dim = w3.shape[1]
    x = x.astype(jnp.float32)

    if B <= tile_m:
        # Single VMEM-resident block: no grid, no software pipeline / double buffering.
        vmem = pl.BlockSpec(memory_space=pltpu.MemorySpace.VMEM)
        return pl.pallas_call(
            _mlp_kernel,
            out_shape=jax.ShapeDtypeStruct((B, out_dim), jnp.float32),
            in_specs=[vmem] * 7,
            out_specs=vmem,
        )(x, w1, b1, w2, b2, w3, b3)

    # Batch-tiled path: weights stay VMEM-resident (constant block index) while the
    # activations stream over the batch; batch axis is "parallel" (v7x dual-TC shard).
    b_pad = pl.cdiv(B, tile_m) * tile_m
    if b_pad != B:
        x = jnp.pad(x, ((0, b_pad - B), (0, 0)))
    grid = (b_pad // tile_m,)

    def resident(a):
        return pl.BlockSpec(a.shape, lambda i: (0, 0))

    out = pl.pallas_call(
        _mlp_kernel,
        out_shape=jax.ShapeDtypeStruct((b_pad, out_dim), jnp.float32),
        grid=grid,
        in_specs=[
            pl.BlockSpec((tile_m, in_dim), lambda i: (i, 0)),
            resident(w1), resident(b1),
            resident(w2), resident(b2),
            resident(w3), resident(b3),
        ],
        out_specs=pl.BlockSpec((tile_m, out_dim), lambda i: (i, 0)),
        compiler_params=pltpu.CompilerParams(
            dimension_semantics=("parallel",),
        ),
    )(x, w1, b1, w2, b2, w3, b3)
    return out[:B]


def _reference_forward(x, params):
    # Pure-JAX f32 reference matching the PyTorch forward.
    w1, b1, w2, b2, w3, b3 = params
    h = _leaky_relu(x @ w1 + b1)
    h = _leaky_relu(h @ w2 + b2)
    return jax.nn.sigmoid(h @ w3 + b3)


def init_params(key, in_dim=IN_DIM, hidden=HIDDEN, out_dim=4):
    # Mirrors `nn.init.normal_(m.weight, 0.0, 0.02)` for the Linear weights;
    # biases use small deterministic uniform values.
    ks = jax.random.split(key, 6)
    w1 = 0.02 * jax.random.normal(ks[0], (in_dim, hidden), jnp.float32)
    b1 = 0.01 * jax.random.uniform(ks[1], (1, hidden), jnp.float32, -1.0, 1.0)
    w2 = 0.02 * jax.random.normal(ks[2], (hidden, hidden), jnp.float32)
    b2 = 0.01 * jax.random.uniform(ks[3], (1, hidden), jnp.float32, -1.0, 1.0)
    w3 = 0.02 * jax.random.normal(ks[4], (hidden, out_dim), jnp.float32)
    b3 = 0.01 * jax.random.uniform(ks[5], (1, out_dim), jnp.float32, -1.0, 1.0)
    return (w1, b1, w2, b2, w3, b3)


if __name__ == "__main__":
    key = jax.random.PRNGKey(0)
    k_x1, k_x2, k_p = jax.random.split(key, 3)

    OUT_DIM = 4  # args.alignment == 'glocal', args.num_classes == 4
    params = init_params(k_p, IN_DIM, HIDDEN, OUT_DIM)
    padded = prepare_params(params)

    # Small batch -> single-block (no-grid) path.
    x_small = jax.random.normal(k_x1, (8, IN_DIM), jnp.float32)
    out_small = jax.block_until_ready(discriminator_forward(x_small, padded))
    ref_small = _reference_forward(x_small, params)
    assert out_small.shape == (8, OUT_DIM), out_small.shape
    assert jnp.allclose(out_small, ref_small, atol=1e-2, rtol=1e-2), \
        float(jnp.max(jnp.abs(out_small - ref_small)))

    # Larger, non-multiple batch -> batch-tiled path with VMEM-resident weights.
    x_big = jax.random.normal(k_x2, (300, IN_DIM), jnp.float32)
    out_big = jax.block_until_ready(discriminator_forward(x_big, padded, tile_m=256))
    ref_big = _reference_forward(x_big, params)
    assert out_big.shape == (300, OUT_DIM), out_big.shape
    assert jnp.allclose(out_big, ref_big, atol=1e-2, rtol=1e-2), \
        float(jnp.max(jnp.abs(out_big - ref_big)))

    print("KERNEL_OK")
</pallas_src>

<mosaic_0001>
module attributes {stable_mosaic.version = 11 : i64} {
  func.func @_mlp_kernel(%arg0: memref<8x128xf32, #tpu.memory_space<vmem>>, %arg1: memref<128x512xbf16, #tpu.memory_space<vmem>>, %arg2: memref<1x512xf32, #tpu.memory_space<vmem>>, %arg3: memref<512x512xbf16, #tpu.memory_space<vmem>>, %arg4: memref<1x512xf32, #tpu.memory_space<vmem>>, %arg5: memref<512x4xbf16, #tpu.memory_space<vmem>>, %arg6: memref<1x4xf32, #tpu.memory_space<vmem>>, %arg7: memref<8x4xf32, #tpu.memory_space<vmem>>) attributes {dimension_semantics = [], scalar_prefetch = 0 : i64, scratch_operands = 0 : i64, tpu.core_type = #tpu.core_type<tc>} {
    %c0 = arith.constant 0 : index
    %c0_0 = arith.constant 0 : index
    %0 = vector.load %arg0[%c0, %c0_0] : memref<8x128xf32, #tpu.memory_space<vmem>>, vector<8x128xf32>
    %1 = arith.truncf %0 : vector<8x128xf32> to vector<8x128xbf16>
    %c0_1 = arith.constant 0 : index
    %c0_2 = arith.constant 0 : index
    %2 = vector.load %arg1[%c0_1, %c0_2] : memref<128x512xbf16, #tpu.memory_space<vmem>>, vector<128x512xbf16>
    %cst = arith.constant dense<0.000000e+00> : vector<8x512xf32>
    %3 = tpu.matmul %1, %2, %cst {dimension_numbers = #tpu.dot_dimension_numbers<[1], [0], [0], [1], [0, 0, 1, 1], [], []>} : vector<8x128xbf16>, vector<128x512xbf16>, vector<8x512xf32> -> vector<8x512xf32>
    %c0_3 = arith.constant 0 : index
    %c0_4 = arith.constant 0 : index
    %4 = vector.load %arg2[%c0_3, %c0_4] : memref<1x512xf32, #tpu.memory_space<vmem>>, vector<1x512xf32>
    %5 = vector.broadcast %4 : vector<1x512xf32> to vector<8x512xf32>
    %6 = arith.addf %3, %5 : vector<8x512xf32>
    %cst_5 = arith.constant 0.000000e+00 : f32
    %7 = vector.broadcast %cst_5 : f32 to vector<8x512xf32>
    %8 = arith.cmpf oge, %6, %7 : vector<8x512xf32>
    %cst_6 = arith.constant 2.000000e-01 : f32
    %9 = vector.broadcast %cst_6 : f32 to vector<8x512xf32>
    %10 = arith.mulf %9, %6 : vector<8x512xf32>
    %11 = arith.select %8, %6, %10 : vector<8x512xi1>, vector<8x512xf32>
    %12 = arith.truncf %11 : vector<8x512xf32> to vector<8x512xbf16>
    %c0_7 = arith.constant 0 : index
    %c0_8 = arith.constant 0 : index
    %13 = vector.load %arg3[%c0_7, %c0_8] : memref<512x512xbf16, #tpu.memory_space<vmem>>, vector<512x512xbf16>
    %cst_9 = arith.constant dense<0.000000e+00> : vector<8x512xf32>
    %14 = tpu.matmul %12, %13, %cst_9 {dimension_numbers = #tpu.dot_dimension_numbers<[1], [0], [0], [1], [0, 0, 1, 1], [], []>} : vector<8x512xbf16>, vector<512x512xbf16>, vector<8x512xf32> -> vector<8x512xf32>
    %c0_10 = arith.constant 0 : index
    %c0_11 = arith.constant 0 : index
    %15 = vector.load %arg4[%c0_10, %c0_11] : memref<1x512xf32, #tpu.memory_space<vmem>>, vector<1x512xf32>
    %16 = vector.broadcast %15 : vector<1x512xf32> to vector<8x512xf32>
    %17 = arith.addf %14, %16 : vector<8x512xf32>
    %cst_12 = arith.constant 0.000000e+00 : f32
    %18 = vector.broadcast %cst_12 : f32 to vector<8x512xf32>
    %19 = arith.cmpf oge, %17, %18 : vector<8x512xf32>
    %cst_13 = arith.constant 2.000000e-01 : f32
    %20 = vector.broadcast %cst_13 : f32 to vector<8x512xf32>
    %21 = arith.mulf %20, %17 : vector<8x512xf32>
    %22 = arith.select %19, %17, %21 : vector<8x512xi1>, vector<8x512xf32>
    %23 = arith.truncf %22 : vector<8x512xf32> to vector<8x512xbf16>
    %c0_14 = arith.constant 0 : index
    %c0_15 = arith.constant 0 : index
    %24 = vector.load %arg5[%c0_14, %c0_15] : memref<512x4xbf16, #tpu.memory_space<vmem>>, vector<512x4xbf16>
    %cst_16 = arith.constant dense<0.000000e+00> : vector<8x4xf32>
    %25 = tpu.matmul %23, %24, %cst_16 {dimension_numbers = #tpu.dot_dimension_numbers<[1], [0], [0], [1], [0, 0, 1, 1], [], []>} : vector<8x512xbf16>, vector<512x4xbf16>, vector<8x4xf32> -> vector<8x4xf32>
    %c0_17 = arith.constant 0 : index
    %c0_18 = arith.constant 0 : index
    %26 = vector.load %arg6[%c0_17, %c0_18] : memref<1x4xf32, #tpu.memory_space<vmem>>, vector<1x4xf32>
    %27 = vector.broadcast %26 : vector<1x4xf32> to vector<8x4xf32>
    %28 = arith.addf %25, %27 : vector<8x4xf32>
    %29 = arith.negf %28 : vector<8x4xf32>
    %30 = math.exp %29 : vector<8x4xf32>
    %cst_19 = arith.constant 1.000000e+00 : f32
    %31 = vector.broadcast %cst_19 : f32 to vector<8x4xf32>
    %32 = arith.addf %31, %30 : vector<8x4xf32>
    %33 = arith.divf %31, %32 : vector<8x4xf32>
    %c0_20 = arith.constant 0 : index
    %c0_21 = arith.constant 0 : index
    %34 = vector.load %arg7[%c0_20, %c0_21] : memref<8x4xf32, #tpu.memory_space<vmem>>, vector<8x4xf32>
    tpu.vector_store %arg7[%c0_20, %c0_21], %33 {strides = array<i32>} : memref<8x4xf32, #tpu.memory_space<vmem>>, vector<8x4xf32>,
    return
  }
}

</mosaic_0001>

<llo_original>
// kernel: tpu_custom_call.1
$region0: #{tpu_custom_call.1}
  #allocation0 [shape = 'u32[]', space=smem, size = 0x4, offset = 0x4, fixed_abs, tag = 'smem constant byte address 0x4 - core index']
  #allocation1 [shape = 'u32[72,128]{1,0:T(1,128)}', space=vmem, size = 0x9000, scoped, tag = 'internal scratch']
  %s0 = inlined_call_operand.vmem [shape: f32[8,128], index: 0, kind: input, shape index: {}]
  %s1 = inlined_call_operand.vmem [shape: bf16[128,512], index: 1, kind: input, shape index: {}]
  %s2 = inlined_call_operand.hbm [shape: f32[1,512], index: 2, kind: input, shape index: {}]
  %s3 = inlined_call_operand.hbm [shape: bf16[512,512], index: 3, kind: input, shape index: {}]
  %s4 = inlined_call_operand.hbm [shape: f32[1,512], index: 4, kind: input, shape index: {}]
  %s5 = inlined_call_operand.vmem [shape: bf16[512,4], index: 5, kind: input, shape index: {}]
  %s6 = inlined_call_operand.vmem [shape: f32[1,4], index: 6, kind: input, shape index: {}]
  %s7 = inlined_call_operand.vmem [shape: f32[8,4], index: 7, kind: output, shape index: {}]
  %s8 = sld [smem:[#allocation0]]
  $region50: #{tpu_custom_call.1} parent=0
    _
  %s10 = ssub.s32 1, %s8
  %s11 = scalar_select 0, %s10, %s8
  $region1: #{tpu_custom_call.1} parent=0
    #allocation2 [shape = 'u8[2048]{0}', space=vmem, size = 0x800, scoped, tag = 'input window, operand 2, single buffered']
    #allocation3 [shape = 's32[1]{0}', space=sflag, size = 0x4, scoped, tag = 'scoped memory for tpu_custom_call.1']
    #allocation4 [shape = 'u8[524288]{0}', space=vmem, size = 0x80000, scoped, tag = 'input window, operand 3, single buffered']
    #allocation5 [shape = 's32[1]{0}', space=sflag, size = 0x4, scoped, tag = 'scoped memory for tpu_custom_call.1']
    #allocation6 [shape = 'u8[2048]{0}', space=vmem, size = 0x800, scoped, tag = 'input window, operand 4, single buffered']
    %12 = vsyncpa [#allocation3], 0
    %13 = vsyncpa [#allocation5], 0
    // Predicated region
    $region2: #{tpu_custom_call.1} parent=1 // pred_check
      _
    $region3: #{tpu_custom_call.1} parent=1 // pred_check_branch
      %15 = sbr.rel (0) target = $region5
    $region4: #{tpu_custom_call.1} parent=1 // pred_region
      _
    $region5: #{tpu_custom_call.1} parent=1 // pred_fallthru
      _
    // Predicated region
    $region6: #{tpu_custom_call.1} parent=1 // pred_check
      _
    $region7: #{tpu_custom_call.1} parent=1 // pred_check_branch
      %17 = sbr.rel (0) target = $region9
    $region8: #{tpu_custom_call.1} parent=1 // pred_region
      _
    $region9: #{tpu_custom_call.1} parent=1 // pred_fallthru
      _
    // Predicated region
    $region10: #{tpu_custom_call.1} parent=1 // pred_check
      _
    $region11: #{tpu_custom_call.1} parent=1 // pred_check_branch
      %19 = sbr.rel (0) target = $region13
    $region12: #{tpu_custom_call.1} parent=1 // pred_region
      %21 = vsyncadd [#allocation3], 0
      %s23 = sshll.u32 %s2, 4
      %s24 = int_to_ptr.hbm [resolvable:$true] %s23
      %s25 = sshll.u32 [#allocation2], 4
      %s26 = int_to_ptr.vmem [resolvable:$true] %s25
      %28 = dma.hbm_to_vmem [thread:$0]  %s24, 64, %s26, [#allocation3]
    $region13: #{tpu_custom_call.1} parent=1 // pred_fallthru
      _
    // Predicated region
    $region14: #{tpu_custom_call.1} parent=1 // pred_check
      _
    $region15: #{tpu_custom_call.1} parent=1 // pred_check_branch
      %30 = sbr.rel (0) target = $region17
    $region16: #{tpu_custom_call.1} parent=1 // pred_region
      %32 = vsyncadd [#allocation5], 0
      %s33 = sshll.u32 %s3, 4
      %s34 = int_to_ptr.hbm [resolvable:$true] %s33
      %s35 = sshll.u32 [#allocation4], 4
      %s36 = int_to_ptr.vmem [resolvable:$true] %s35
      %41 = dma.hbm_to_vmem [thread:$0]  %s34, 16384, %s36, [#allocation5], 256, 256, 16
    $region17: #{tpu_custom_call.1} parent=1 // pred_fallthru
      _
    // Predicated region
    $region18: #{tpu_custom_call.1} parent=1 // pred_check
      _
    $region19: #{tpu_custom_call.1} parent=1 // pred_check_branch
      %43 = sbr.rel (0) target = $region21
    $region20: #{tpu_custom_call.1} parent=1 // pred_region
      %45 = vsyncadd [#allocation5], 0
      %s47 = sshll.u32 %s4, 4
      %s48 = int_to_ptr.hbm [resolvable:$true] %s47
      %s49 = sshll.u32 [#allocation6], 4
      %s50 = int_to_ptr.vmem [resolvable:$true] %s49
      %52 = dma.hbm_to_vmem [thread:$0]  %s48, 64, %s50, [#allocation5]
    $region21: #{tpu_custom_call.1} parent=1 // pred_fallthru
      _
    // Predicated region
    $region22: #{tpu_custom_call.1} parent=1 // pred_check
      _
    $region23: #{tpu_custom_call.1} parent=1 // pred_check_branch
      %54 = sbr.rel (0) target = $region25
    $region24: #{tpu_custom_call.1} parent=1 // pred_region
      _
    $region25: #{tpu_custom_call.1} parent=1 // pred_fallthru
      _
    // Predicated region
    $region26: #{tpu_custom_call.1} parent=1 // pred_check
      _
    $region27: #{tpu_custom_call.1} parent=1 // pred_check_branch
      %56 = sbr.rel (0) target = $region29
    $region28: #{tpu_custom_call.1} parent=1 // pred_region
      _
    $region29: #{tpu_custom_call.1} parent=1 // pred_fallthru
      _
    // Predicated region
    $region30: #{tpu_custom_call.1} parent=1 // pred_check
      _
    $region31: #{tpu_custom_call.1} parent=1 // pred_check_branch
      %58 = sbr.rel (0) target = $region33
    $region32: #{tpu_custom_call.1} parent=1 // pred_region
      %60 = dma.done [#allocation3], 64
    $region33: #{tpu_custom_call.1} parent=1 // pred_fallthru
      _
    // Predicated region
    $region34: #{tpu_custom_call.1} parent=1 // pred_check
      _
    $region35: #{tpu_custom_call.1} parent=1 // pred_check_branch
      %62 = sbr.rel (0) target = $region37
    $region36: #{tpu_custom_call.1} parent=1 // pred_region
      %64 = dma.done [#allocation5], 16384
    $region37: #{tpu_custom_call.1} parent=1 // pred_fallthru
      _
    // Predicated region
    $region38: #{tpu_custom_call.1} parent=1 // pred_check
      _
    $region39: #{tpu_custom_call.1} parent=1 // pred_check_branch
      %66 = sbr.rel (0) target = $region41
    $region40: #{tpu_custom_call.1} parent=1 // pred_region
      %68 = dma.done [#allocation5], 64
    $region41: #{tpu_custom_call.1} parent=1 // pred_fallthru
      _
    %v69 = vld [vmem:[%s0] sm:$0xff]
    %v70 = vpack.c.bf16 %v69, %v69
    %v71 = vld [vmem:[%s1] sm:$0xff]
    %v72 = vld [vmem:[%s1 + $0x8] sm:$0xff]
    %v73 = vld [vmem:[%s1 + $0x10] sm:$0xff]
    %v74 = vld [vmem:[%s1 + $0x18] sm:$0xff]
    %v75 = vld [vmem:[%s1 + $0x20] sm:$0xff]
    %v76 = vld [vmem:[%s1 + $0x28] sm:$0xff]
    %v77 = vld [vmem:[%s1 + $0x30] sm:$0xff]
    %v78 = vld [vmem:[%s1 + $0x38] sm:$0xff]
    %v79 = vld [vmem:[%s1 + $0x40] sm:$0xff]
    %v80 = vld [vmem:[%s1 + $0x48] sm:$0xff]
    %v81 = vld [vmem:[%s1 + $0x50] sm:$0xff]
    %v82 = vld [vmem:[%s1 + $0x58] sm:$0xff]
    %v83 = vld [vmem:[%s1 + $0x60] sm:$0xff]
    %v84 = vld [vmem:[%s1 + $0x68] sm:$0xff]
    %v85 = vld [vmem:[%s1 + $0x70] sm:$0xff]
    %v86 = vld [vmem:[%s1 + $0x78] sm:$0xff]
    %v87 = vld [vmem:[%s1 + $0x80] sm:$0xff]
    %v88 = vld [vmem:[%s1 + $0x88] sm:$0xff]
    %v89 = vld [vmem:[%s1 + $0x90] sm:$0xff]
    %v90 = vld [vmem:[%s1 + $0x98] sm:$0xff]
    %v91 = vld [vmem:[%s1 + $0xa0] sm:$0xff]
    %v92 = vld [vmem:[%s1 + $0xa8] sm:$0xff]
    %v93 = vld [vmem:[%s1 + $0xb0] sm:$0xff]
    %v94 = vld [vmem:[%s1 + $0xb8] sm:$0xff]
    %v95 = vld [vmem:[%s1 + $0xc0] sm:$0xff]
    %v96 = vld [vmem:[%s1 + $0xc8] sm:$0xff]
    %v97 = vld [vmem:[%s1 + $0xd0] sm:$0xff]
    %v98 = vld [vmem:[%s1 + $0xd8] sm:$0xff]
    %v99 = vld [vmem:[%s1 + $0xe0] sm:$0xff]
    %v100 = vld [vmem:[%s1 + $0xe8] sm:$0xff]
    %v101 = vld [vmem:[%s1 + $0xf0] sm:$0xff]
    %v102 = vld [vmem:[%s1 + $0xf8] sm:$0xff]
    %v103 = vld [vmem:[#allocation2] sm:$0xf]
    %v105 = vperm.slane %v103, 0
    %v106 = vperm.slane %v103, 1
    %v107 = vperm.slane %v103, 2
    %v108 = vperm.slane %v103, 3
    %v145 = vunpack.c.l.b16 %v71
    %v146 = vunpack.c.h.b16 %v71
    %v147 = vunpack.c.l.b16 %v72
    %v148 = vunpack.c.h.b16 %v72
    %v149 = vunpack.c.l.b16 %v73
    %v150 = vunpack.c.h.b16 %v73
    %v151 = vunpack.c.l.b16 %v74
    %v152 = vunpack.c.h.b16 %v74
    %v153 = vunpack.c.l.b16 %v75
    %v154 = vunpack.c.h.b16 %v75
    %v155 = vunpack.c.l.b16 %v76
    %v156 = vunpack.c.h.b16 %v76
    %v157 = vunpack.c.l.b16 %v77
    %v158 = vunpack.c.h.b16 %v77
    %v159 = vunpack.c.l.b16 %v78
    %v160 = vunpack.c.h.b16 %v78
    %v161 = vunpack.c.l.b16 %v79
    %v162 = vunpack.c.h.b16 %v79
    %v163 = vunpack.c.l.b16 %v80
    %v164 = vunpack.c.h.b16 %v80
    %v165 = vunpack.c.l.b16 %v81
    %v166 = vunpack.c.h.b16 %v81
    %v167 = vunpack.c.l.b16 %v82
    %v168 = vunpack.c.h.b16 %v82
    %v169 = vunpack.c.l.b16 %v83
    %v170 = vunpack.c.h.b16 %v83
    %v171 = vunpack.c.l.b16 %v84
    %v172 = vunpack.c.h.b16 %v84
    %v173 = vunpack.c.l.b16 %v85
    %v174 = vunpack.c.h.b16 %v85
    %v175 = vunpack.c.l.b16 %v86
    %v176 = vunpack.c.h.b16 %v86
    %v177 = vunpack.c.l.b16 %v87
    %v178 = vunpack.c.h.b16 %v87
    %v179 = vunpack.c.l.b16 %v88
    %v180 = vunpack.c.h.b16 %v88
    %v181 = vunpack.c.l.b16 %v89
    %v182 = vunpack.c.h.b16 %v89
    %v183 = vunpack.c.l.b16 %v90
    %v184 = vunpack.c.h.b16 %v90
    %v185 = vunpack.c.l.b16 %v91
    %v186 = vunpack.c.h.b16 %v91
    %v187 = vunpack.c.l.b16 %v92
    %v188 = vunpack.c.h.b16 %v92
    %v189 = vunpack.c.l.b16 %v93
    %v190 = vunpack.c.h.b16 %v93
    %v191 = vunpack.c.l.b16 %v94
    %v192 = vunpack.c.h.b16 %v94
    %v193 = vunpack.c.l.b16 %v95
    %v194 = vunpack.c.h.b16 %v95
    %v195 = vunpack.c.l.b16 %v96
    %v196 = vunpack.c.h.b16 %v96
    %v197 = vunpack.c.l.b16 %v97
    %v198 = vunpack.c.h.b16 %v97
    %v199 = vunpack.c.l.b16 %v98
    %v200 = vunpack.c.h.b16 %v98
    %v201 = vunpack.c.l.b16 %v99
    %v202 = vunpack.c.h.b16 %v99
    %v203 = vunpack.c.l.b16 %v100
    %v204 = vunpack.c.h.b16 %v100
    %v205 = vunpack.c.l.b16 %v101
    %v206 = vunpack.c.h.b16 %v101
    %v207 = vunpack.c.l.b16 %v102
    %v208 = vunpack.c.h.b16 %v102
    %v209 = vpack.c.b16 %v149, %v145
    %v210 = vpack.c.b16 %v150, %v146
    %v211 = vpack.c.b16 %v151, %v147
    %v212 = vpack.c.b16 %v152, %v148
    %v213 = vpack.c.b16 %v157, %v153
    %v214 = vpack.c.b16 %v158, %v154
    %v215 = vpack.c.b16 %v159, %v155
    %v216 = vpack.c.b16 %v160, %v156
    %v217 = vpack.c.b16 %v165, %v161
    %v218 = vpack.c.b16 %v166, %v162
    %v219 = vpack.c.b16 %v167, %v163
    %v220 = vpack.c.b16 %v168, %v164
    %v221 = vpack.c.b16 %v173, %v169
    %v222 = vpack.c.b16 %v174, %v170
    %v223 = vpack.c.b16 %v175, %v171
    %v224 = vpack.c.b16 %v176, %v172
    %v225 = vpack.c.b16 %v181, %v177
    %v226 = vpack.c.b16 %v182, %v178
    %v227 = vpack.c.b16 %v183, %v179
    %v228 = vpack.c.b16 %v184, %v180
    %v229 = vpack.c.b16 %v189, %v185
    %v230 = vpack.c.b16 %v190, %v186
    %v231 = vpack.c.b16 %v191, %v187
    %v232 = vpack.c.b16 %v192, %v188
    %v233 = vpack.c.b16 %v197, %v193
    %v234 = vpack.c.b16 %v198, %v194
    %v235 = vpack.c.b16 %v199, %v195
    %v236 = vpack.c.b16 %v200, %v196
    %v237 = vpack.c.b16 %v205, %v201
    %v238 = vpack.c.b16 %v206, %v202
    %v239 = vpack.c.b16 %v207, %v203
    %v240 = vpack.c.b16 %v208, %v204
    %273 = vmatpush.bf16.msra.mxu0 %v237
    %274 = vmatpush.bf16.msra.mxu0 %v233
    %275 = vmatpush.bf16.msra.mxu0 %v229
    %276 = vmatpush.bf16.msra.mxu0 %v225
    %277 = vmatpush.bf16.msra.mxu0 %v221
    %278 = vmatpush.bf16.msra.mxu0 %v217
    %279 = vmatpush.bf16.msra.mxu0 %v213
    %280 = vmatpush.bf16.msra.mxu0 %v209
    %281 = vmatmul.bf16.gmra.mxu0 %v70
    %v282 = vpop.f32.mrf.mxu0
    %v283 = vadd.f32 %v105, %v282
    %v284 = vpop.f32.mrf.mxu0
    %285 = vdwg.mxu0
    %286 = vmatpush.bf16.msra.mxu0 %v238
    %287 = vmatpush.bf16.msra.mxu0 %v234
    %288 = vmatpush.bf16.msra.mxu0 %v230
    %289 = vmatpush.bf16.msra.mxu0 %v226
    %290 = vmatpush.bf16.msra.mxu0 %v222
    %291 = vmatpush.bf16.msra.mxu0 %v218
    %292 = vmatpush.bf16.msra.mxu0 %v214
    %293 = vmatpush.bf16.msra.mxu0 %v210
    %294 = vmatmul.bf16.gmra.mxu0 %v70
    %v295 = vpop.f32.mrf.mxu0
    %v296 = vadd.f32 %v106, %v295
    %v297 = vpop.f32.mrf.mxu0
    %298 = vdwg.mxu0
    %299 = vmatpush.bf16.msra.mxu0 %v239
    %300 = vmatpush.bf16.msra.mxu0 %v235
    %301 = vmatpush.bf16.msra.mxu0 %v231
    %302 = vmatpush.bf16.msra.mxu0 %v227
    %303 = vmatpush.bf16.msra.mxu0 %v223
    %304 = vmatpush.bf16.msra.mxu0 %v219
    %305 = vmatpush.bf16.msra.mxu0 %v215
    %306 = vmatpush.bf16.msra.mxu0 %v211
    %307 = vmatmul.bf16.gmra.mxu0 %v70
    %v308 = vpop.f32.mrf.mxu0
    %v309 = vadd.f32 %v107, %v308
    %v310 = vpop.f32.mrf.mxu0
    %311 = vdwg.mxu0
    %312 = vmatpush.bf16.msra.mxu0 %v240
    %313 = vmatpush.bf16.msra.mxu0 %v236
    %314 = vmatpush.bf16.msra.mxu0 %v232
    %315 = vmatpush.bf16.msra.mxu0 %v228
    %316 = vmatpush.bf16.msra.mxu0 %v224
    %317 = vmatpush.bf16.msra.mxu0 %v220
    %318 = vmatpush.bf16.msra.mxu0 %v216
    %319 = vmatpush.bf16.msra.mxu0 %v212
    %320 = vmatmul.bf16.gmra.mxu0 %v70
    %v321 = vpop.f32.mrf.mxu0
    %v322 = vadd.f32 %v108, %v321
    %v323 = vpop.f32.mrf.mxu0
    %324 = vdwg.mxu0
    %vm325 = vcmp.ge.f32.partialorder %v283, 0.0
    %vm326 = vcmp.ge.f32.partialorder %v296, 0.0
    %vm327 = vcmp.ge.f32.partialorder %v309, 0.0
    %vm328 = vcmp.ge.f32.partialorder %v322, 0.0
    %v329 = vmul.f32 %v283, 0.2
    %v330 = vmul.f32 %v296, 0.2
    %v331 = vmul.f32 %v309, 0.2
    %v332 = vmul.f32 %v322, 0.2
    %v333 = vsel %vm325, %v283, %v329
    %v334 = vsel %vm326, %v296, %v330
    %v335 = vsel %vm327, %v309, %v331
    %v336 = vsel %vm328, %v322, %v332
    %v337 = vpack.c.bf16 %v333, %v333
    %v338 = vpack.c.bf16 %v334, %v334
    %v339 = vpack.c.bf16 %v335, %v335
    %v340 = vpack.c.bf16 %v336, %v336
    %v341 = vld [vmem:[#allocation4] sm:$0xff]
    %v342 = vld [vmem:[#allocation4 + $0x8] sm:$0xff]
    %v343 = vld [vmem:[#allocation4 + $0x10] sm:$0xff]
    %v344 = vld [vmem:[#allocation4 + $0x18] sm:$0xff]
    %v345 = vld [vmem:[#allocation4 + $0x20] sm:$0xff]
    %v346 = vld [vmem:[#allocation4 + $0x28] sm:$0xff]
    %v347 = vld [vmem:[#allocation4 + $0x30] sm:$0xff]
    %v348 = vld [vmem:[#allocation4 + $0x38] sm:$0xff]
    %v349 = vld [vmem:[#allocation4 + $0x40] sm:$0xff]
    %v350 = vld [vmem:[#allocation4 + $0x48] sm:$0xff]
    %v351 = vld [vmem:[#allocation4 + $0x50] sm:$0xff]
    %v352 = vld [vmem:[#allocation4 + $0x58] sm:$0xff]
    %v353 = vld [vmem:[#allocation4 + $0x60] sm:$0xff]
    %v354 = vld [vmem:[#allocation4 + $0x68] sm:$0xff]
    %v355 = vld [vmem:[#allocation4 + $0x70] sm:$0xff]
    %v356 = vld [vmem:[#allocation4 + $0x78] sm:$0xff]
    %v357 = vld [vmem:[#allocation4 + $0x80] sm:$0xff]
    %v358 = vld [vmem:[#allocation4 + $0x88] sm:$0xff]
    %v359 = vld [vmem:[#allocation4 + $0x90] sm:$0xff]
    %v360 = vld [vmem:[#allocation4 + $0x98] sm:$0xff]
    %v361 = vld [vmem:[#allocation4 + $0xa0] sm:$0xff]
    %v362 = vld [vmem:[#allocation4 + $0xa8] sm:$0xff]
    %v363 = vld [vmem:[#allocation4 + $0xb0] sm:$0xff]
    %v364 = vld [vmem:[#allocation4 + $0xb8] sm:$0xff]
    %v365 = vld [vmem:[#allocation4 + $0xc0] sm:$0xff]
    %v366 = vld [vmem:[#allocation4 + $0xc8] sm:$0xff]
    %v367 = vld [vmem:[#allocation4 + $0xd0] sm:$0xff]
    %v368 = vld [vmem:[#allocation4 + $0xd8] sm:$0xff]
    %v369 = vld [vmem:[#allocation4 + $0xe0] sm:$0xff]
    %v370 = vld [vmem:[#allocation4 + $0xe8] sm:$0xff]
    %v371 = vld [vmem:[#allocation4 + $0xf0] sm:$0xff]
    %v372 = vld [vmem:[#allocation4 + $0xf8] sm:$0xff]
    %v373 = vld [vmem:[#allocation4 + $0x100] sm:$0xff]
    %v374 = vld [vmem:[#allocation4 + $0x108] sm:$0xff]
    %v375 = vld [vmem:[#allocation4 + $0x110] sm:$0xff]
    %v376 = vld [vmem:[#allocation4 + $0x118] sm:$0xff]
    %v377 = vld [vmem:[#allocation4 + $0x120] sm:$0xff]
    %v378 = vld [vmem:[#allocation4 + $0x128] sm:$0xff]
    %v379 = vld [vmem:[#allocation4 + $0x130] sm:$0xff]
    %v380 = vld [vmem:[#allocation4 + $0x138] sm:$0xff]
    %v381 = vld [vmem:[#allocation4 + $0x140] sm:$0xff]
    %v382 = vld [vmem:[#allocation4 + $0x148] sm:$0xff]
    %v383 = vld [vmem:[#allocation4 + $0x150] sm:$0xff]
    %v384 = vld [vmem:[#allocation4 + $0x158] sm:$0xff]
    %v385 = vld [vmem:[#allocation4 + $0x160] sm:$0xff]
    %v386 = vld [vmem:[#allocation4 + $0x168] sm:$0xff]
    %v387 = vld [vmem:[#allocation4 + $0x170] sm:$0xff]
    %v388 = vld [vmem:[#allocation4 + $0x178] sm:$0xff]
    %v389 = vld [vmem:[#allocation4 + $0x180] sm:$0xff]
    %v390 = vld [vmem:[#allocation4 + $0x188] sm:$0xff]
    %v391 = vld [vmem:[#allocation4 + $0x190] sm:$0xff]
    %v392 = vld [vmem:[#allocation4 + $0x198] sm:$0xff]
    %v393 = vld [vmem:[#allocation4 + $0x1a0] sm:$0xff]
    %v394 = vld [vmem:[#allocation4 + $0x1a8] sm:$0xff]
    %v395 = vld [vmem:[#allocation4 + $0x1b0] sm:$0xff]
    %v396 = vld [vmem:[#allocation4 + $0x1b8] sm:$0xff]
    %v397 = vld [vmem:[#allocation4 + $0x1c0] sm:$0xff]
    %v398 = vld [vmem:[#allocation4 + $0x1c8] sm:$0xff]
    %v399 = vld [vmem:[#allocation4 + $0x1d0] sm:$0xff]
    %v400 = vld [vmem:[#allocation4 + $0x1d8] sm:$0xff]
    %v401 = vld [vmem:[#allocation4 + $0x1e0] sm:$0xff]
    %v402 = vld [vmem:[#allocation4 + $0x1e8] sm:$0xff]
    %v403 = vld [vmem:[#allocation4 + $0x1f0] sm:$0xff]
    %v404 = vld [vmem:[#allocation4 + $0x1f8] sm:$0xff]
    %v405 = vld [vmem:[#allocation4 + $0x200] sm:$0xff]
    %v406 = vld [vmem:[#allocation4 + $0x208] sm:$0xff]
    %v407 = vld [vmem:[#allocation4 + $0x210] sm:$0xff]
    %v408 = vld [vmem:[#allocation4 + $0x218] sm:$0xff]
    %v409 = vld [vmem:[#allocation4 + $0x220] sm:$0xff]
    %v410 = vld [vmem:[#allocation4 + $0x228] sm:$0xff]
    %v411 = vld [vmem:[#allocation4 + $0x230] sm:$0xff]
    %v412 = vld [vmem:[#allocation4 + $0x238] sm:$0xff]
    %v413 = vld [vmem:[#allocation4 + $0x240] sm:$0xff]
    %v414 = vld [vmem:[#allocation4 + $0x248] sm:$0xff]
    %v415 = vld [vmem:[#allocation4 + $0x250] sm:$0xff]
    %v416 = vld [vmem:[#allocation4 + $0x258] sm:$0xff]
    %v417 = vld [vmem:[#allocation4 + $0x260] sm:$0xff]
    %v418 = vld [vmem:[#allocation4 + $0x268] sm:$0xff]
    %v419 = vld [vmem:[#allocation4 + $0x270] sm:$0xff]
    %v420 = vld [vmem:[#allocation4 + $0x278] sm:$0xff]
    %v421 = vld [vmem:[#allocation4 + $0x280] sm:$0xff]
    %v422 = vld [vmem:[#allocation4 + $0x288] sm:$0xff]
    %v423 = vld [vmem:[#allocation4 + $0x290] sm:$0xff]
    %v424 = vld [vmem:[#allocation4 + $0x298] sm:$0xff]
    %v425 = vld [vmem:[#allocation4 + $0x2a0] sm:$0xff]
    %v426 = vld [vmem:[#allocation4 + $0x2a8] sm:$0xff]
    %v427 = vld [vmem:[#allocation4 + $0x2b0] sm:$0xff]
    %v428 = vld [vmem:[#allocation4 + $0x2b8] sm:$0xff]
    %v429 = vld [vmem:[#allocation4 + $0x2c0] sm:$0xff]
    %v430 = vld [vmem:[#allocation4 + $0x2c8] sm:$0xff]
    %v431 = vld [vmem:[#allocation4 + $0x2d0] sm:$0xff]
    %v432 = vld [vmem:[#allocation4 + $0x2d8] sm:$0xff]
    %v433 = vld [vmem:[#allocation4 + $0x2e0] sm:$0xff]
    %v434 = vld [vmem:[#allocation4 + $0x2e8] sm:$0xff]
    %v435 = vld [vmem:[#allocation4 + $0x2f0] sm:$0xff]
    %v436 = vld [vmem:[#allocation4 + $0x2f8] sm:$0xff]
    %v437 = vld [vmem:[#allocation4 + $0x300] sm:$0xff]
    %v438 = vld [vmem:[#allocation4 + $0x308] sm:$0xff]
    %v439 = vld [vmem:[#allocation4 + $0x310] sm:$0xff]
    %v440 = vld [vmem:[#allocation4 + $0x318] sm:$0xff]
    %v441 = vld [vmem:[#allocation4 + $0x320] sm:$0xff]
    %v442 = vld [vmem:[#allocation4 + $0x328] sm:$0xff]
    %v443 = vld [vmem:[#allocation4 + $0x330] sm:$0xff]
    %v444 = vld [vmem:[#allocation4 + $0x338] sm:$0xff]
    %v445 = vld [vmem:[#allocation4 + $0x340] sm:$0xff]
    %v446 = vld [vmem:[#allocation4 + $0x348] sm:$0xff]
    %v447 = vld [vmem:[#allocation4 + $0x350] sm:$0xff]
    %v448 = vld [vmem:[#allocation4 + $0x358] sm:$0xff]
    %v449 = vld [vmem:[#allocation4 + $0x360] sm:$0xff]
    %v450 = vld [vmem:[#allocation4 + $0x368] sm:$0xff]
    %v451 = vld [vmem:[#allocation4 + $0x370] sm:$0xff]
    %v452 = vld [vmem:[#allocation4 + $0x378] sm:$0xff]
    %v453 = vld [vmem:[#allocation4 + $0x380] sm:$0xff]
    %v454 = vld [vmem:[#allocation4 + $0x388] sm:$0xff]
    %v455 = vld [vmem:[#allocation4 + $0x390] sm:$0xff]
    %v456 = vld [vmem:[#allocation4 + $0x398] sm:$0xff]
    %v457 = vld [vmem:[#allocation4 + $0x3a0] sm:$0xff]
    %v458 = vld [vmem:[#allocation4 + $0x3a8] sm:$0xff]
    %v459 = vld [vmem:[#allocation4 + $0x3b0] sm:$0xff]
    %v460 = vld [vmem:[#allocation4 + $0x3b8] sm:$0xff]
    %v461 = vld [vmem:[#allocation4 + $0x3c0] sm:$0xff]
    %v462 = vld [vmem:[#allocation4 + $0x3c8] sm:$0xff]
    %v463 = vld [vmem:[#allocation4 + $0x3d0] sm:$0xff]
    %v464 = vld [vmem:[#allocation4 + $0x3d8] sm:$0xff]
    %v465 = vld [vmem:[#allocation4 + $0x3e0] sm:$0xff]
    %v466 = vld [vmem:[#allocation4 + $0x3e8] sm:$0xff]
    %v467 = vld [vmem:[#allocation4 + $0x3f0] sm:$0xff]
    %v468 = vld [vmem:[#allocation4 + $0x3f8] sm:$0xff]
    %v469 = vld [vmem:[#allocation6] sm:$0xf]
    %v471 = vperm.slane %v469, 0
    %v472 = vperm.slane %v469, 1
    %v473 = vperm.slane %v469, 2
    %v474 = vperm.slane %v469, 3
    %v607 = vunpack.c.l.b16 %v341
    %v608 = vunpack.c.h.b16 %v341
    %v609 = vunpack.c.l.b16 %v342
    %v610 = vunpack.c.h.b16 %v342
    %v611 = vunpack.c.l.b16 %v343
    %v612 = vunpack.c.h.b16 %v343
    %v613 = vunpack.c.l.b16 %v344
    %v614 = vunpack.c.h.b16 %v344
    %v615 = vunpack.c.l.b16 %v345
    %v616 = vunpack.c.h.b16 %v345
    %v617 = vunpack.c.l.b16 %v346
    %v618 = vunpack.c.h.b16 %v346
    %v619 = vunpack.c.l.b16 %v347
    %v620 = vunpack.c.h.b16 %v347
    %v621 = vunpack.c.l.b16 %v348
    %v622 = vunpack.c.h.b16 %v348
    %v623 = vunpack.c.l.b16 %v349
    %v624 = vunpack.c.h.b16 %v349
    %v625 = vunpack.c.l.b16 %v350
    %v626 = vunpack.c.h.b16 %v350
    %v627 = vunpack.c.l.b16 %v351
    %v628 = vunpack.c.h.b16 %v351
    %v629 = vunpack.c.l.b16 %v352
    %v630 = vunpack.c.h.b16 %v352
    %v631 = vunpack.c.l.b16 %v353
    %v632 = vunpack.c.h.b16 %v353
    %v633 = vunpack.c.l.b16 %v354
    %v634 = vunpack.c.h.b16 %v354
    %v635 = vunpack.c.l.b16 %v355
    %v636 = vunpack.c.h.b16 %v355
    %v637 = vunpack.c.l.b16 %v356
    %v638 = vunpack.c.h.b16 %v356
    %v639 = vunpack.c.l.b16 %v357
    %v640 = vunpack.c.h.b16 %v357
    %v641 = vunpack.c.l.b16 %v358
    %v642 = vunpack.c.h.b16 %v358
    %v643 = vunpack.c.l.b16 %v359
    %v644 = vunpack.c.h.b16 %v359
    %v645 = vunpack.c.l.b16 %v360
    %v646 = vunpack.c.h.b16 %v360
    %v647 = vunpack.c.l.b16 %v361
    %v648 = vunpack.c.h.b16 %v361
    %v649 = vunpack.c.l.b16 %v362
    %v650 = vunpack.c.h.b16 %v362
    %v651 = vunpack.c.l.b16 %v363
    %v652 = vunpack.c.h.b16 %v363
    %v653 = vunpack.c.l.b16 %v364
    %v654 = vunpack.c.h.b16 %v364
    %v655 = vunpack.c.l.b16 %v365
    %v656 = vunpack.c.h.b16 %v365
    %v657 = vunpack.c.l.b16 %v366
    %v658 = vunpack.c.h.b16 %v366
    %v659 = vunpack.c.l.b16 %v367
    %v660 = vunpack.c.h.b16 %v367
    %v661 = vunpack.c.l.b16 %v368
    %v662 = vunpack.c.h.b16 %v368
    %v663 = vunpack.c.l.b16 %v369
    %v664 = vunpack.c.h.b16 %v369
    %v665 = vunpack.c.l.b16 %v370
    %v666 = vunpack.c.h.b16 %v370
    %v667 = vunpack.c.l.b16 %v371
    %v668 = vunpack.c.h.b16 %v371
    %v669 = vunpack.c.l.b16 %v372
    %v670 = vunpack.c.h.b16 %v372
    %v671 = vunpack.c.l.b16 %v373
    %v672 = vunpack.c.h.b16 %v373
    %v673 = vunpack.c.l.b16 %v374
    %v674 = vunpack.c.h.b16 %v374
    %v675 = vunpack.c.l.b16 %v375
    %v676 = vunpack.c.h.b16 %v375
    %v677 = vunpack.c.l.b16 %v376
    %v678 = vunpack.c.h.b16 %v376
    %v679 = vunpack.c.l.b16 %v377
    %v680 = vunpack.c.h.b16 %v377
    %v681 = vunpack.c.l.b16 %v378
    %v682 = vunpack.c.h.b16 %v378
    %v683 = vunpack.c.l.b16 %v379
    %v684 = vunpack.c.h.b16 %v379
    %v685 = vunpack.c.l.b16 %v380
    %v686 = vunpack.c.h.b16 %v380
    %v687 = vunpack.c.l.b16 %v381
    %v688 = vunpack.c.h.b16 %v381
    %v689 = vunpack.c.l.b16 %v382
    %v690 = vunpack.c.h.b16 %v382
    %v691 = vunpack.c.l.b16 %v383
    %v692 = vunpack.c.h.b16 %v383
    %v693 = vunpack.c.l.b16 %v384
    %v694 = vunpack.c.h.b16 %v384
    %v695 = vunpack.c.l.b16 %v385
    %v696 = vunpack.c.h.b16 %v385
    %v697 = vunpack.c.l.b16 %v386
    %v698 = vunpack.c.h.b16 %v386
    %v699 = vunpack.c.l.b16 %v387
    %v700 = vunpack.c.h.b16 %v387
    %v701 = vunpack.c.l.b16 %v388
    %v702 = vunpack.c.h.b16 %v388
    %v703 = vunpack.c.l.b16 %v389
    %v704 = vunpack.c.h.b16 %v389
    %v705 = vunpack.c.l.b16 %v390
    %v706 = vunpack.c.h.b16 %v390
    %v707 = vunpack.c.l.b16 %v391
    %v708 = vunpack.c.h.b16 %v391
    %v709 = vunpack.c.l.b16 %v392
    %v710 = vunpack.c.h.b16 %v392
    %v711 = vunpack.c.l.b16 %v393
    %v712 = vunpack.c.h.b16 %v393
    %v713 = vunpack.c.l.b16 %v394
    %v714 = vunpack.c.h.b16 %v394
    %v715 = vunpack.c.l.b16 %v395
    %v716 = vunpack.c.h.b16 %v395
    %v717 = vunpack.c.l.b16 %v396
    %v718 = vunpack.c.h.b16 %v396
    %v719 = vunpack.c.l.b16 %v397
    %v720 = vunpack.c.h.b16 %v397
    %v721 = vunpack.c.l.b16 %v398
    %v722 = vunpack.c.h.b16 %v398
    %v723 = vunpack.c.l.b16 %v399
    %v724 = vunpack.c.h.b16 %v399
    %v725 = vunpack.c.l.b16 %v400
    %v726 = vunpack.c.h.b16 %v400
    %v727 = vunpack.c.l.b16 %v401
    %v728 = vunpack.c.h.b16 %v401
    %v729 = vunpack.c.l.b16 %v402
    %v730 = vunpack.c.h.b16 %v402
    %v731 = vunpack.c.l.b16 %v403
    %v732 = vunpack.c.h.b16 %v403
    %v733 = vunpack.c.l.b16 %v404
    %v734 = vunpack.c.h.b16 %v404
    %v735 = vunpack.c.l.b16 %v405
    %v736 = vunpack.c.h.b16 %v405
    %v737 = vunpack.c.l.b16 %v406
    %v738 = vunpack.c.h.b16 %v406
    %v739 = vunpack.c.l.b16 %v407
    %v740 = vunpack.c.h.b16 %v407
    %v741 = vunpack.c.l.b16 %v408
    %v742 = vunpack.c.h.b16 %v408
    %v743 = vunpack.c.l.b16 %v409
    %v744 = vunpack.c.h.b16 %v409
    %v745 = vunpack.c.l.b16 %v410
    %v746 = vunpack.c.h.b16 %v410
    %v747 = vunpack.c.l.b16 %v411
    %v748 = vunpack.c.h.b16 %v411
    %v749 = vunpack.c.l.b16 %v412
    %v750 = vunpack.c.h.b16 %v412
    %v751 = vunpack.c.l.b16 %v413
    %v752 = vunpack.c.h.b16 %v413
    %v753 = vunpack.c.l.b16 %v414
    %v754 = vunpack.c.h.b16 %v414
    %v755 = vunpack.c.l.b16 %v415
    %v756 = vunpack.c.h.b16 %v415
    %v757 = vunpack.c.l.b16 %v416
    %v758 = vunpack.c.h.b16 %v416
    %v759 = vunpack.c.l.b16 %v417
    %v760 = vunpack.c.h.b16 %v417
    %v761 = vunpack.c.l.b16 %v418
    %v762 = vunpack.c.h.b16 %v418
    %v763 = vunpack.c.l.b16 %v419
    %v764 = vunpack.c.h.b16 %v419
    %v765 = vunpack.c.l.b16 %v420
    %v766 = vunpack.c.h.b16 %v420
    %v767 = vunpack.c.l.b16 %v421
    %v768 = vunpack.c.h.b16 %v421
    %v769 = vunpack.c.l.b16 %v422
    %v770 = vunpack.c.h.b16 %v422
    %v771 = vunpack.c.l.b16 %v423
    %v772 = vunpack.c.h.b16 %v423
    %v773 = vunpack.c.l.b16 %v424
    %v774 = vunpack.c.h.b16 %v424
    %v775 = vunpack.c.l.b16 %v425
    %v776 = vunpack.c.h.b16 %v425
    %v777 = vunpack.c.l.b16 %v426
    %v778 = vunpack.c.h.b16 %v426
    %v779 = vunpack.c.l.b16 %v427
    %v780 = vunpack.c.h.b16 %v427
    %v781 = vunpack.c.l.b16 %v428
    %v782 = vunpack.c.h.b16 %v428
    %v783 = vunpack.c.l.b16 %v429
    %v784 = vunpack.c.h.b16 %v429
    %v785 = vunpack.c.l.b16 %v430
    %v786 = vunpack.c.h.b16 %v430
    %v787 = vunpack.c.l.b16 %v431
    %v788 = vunpack.c.h.b16 %v431
    %v789 = vunpack.c.l.b16 %v432
    %v790 = vunpack.c.h.b16 %v432
    %v791 = vunpack.c.l.b16 %v433
    %v792 = vunpack.c.h.b16 %v433
    %v793 = vunpack.c.l.b16 %v434
    %v794 = vunpack.c.h.b16 %v434
    %v795 = vunpack.c.l.b16 %v435
    %v796 = vunpack.c.h.b16 %v435
    %v797 = vunpack.c.l.b16 %v436
    %v798 = vunpack.c.h.b16 %v436
    %v799 = vunpack.c.l.b16 %v437
    %v800 = vunpack.c.h.b16 %v437
    %v801 = vunpack.c.l.b16 %v438
    %v802 = vunpack.c.h.b16 %v438
    %v803 = vunpack.c.l.b16 %v439
    %v804 = vunpack.c.h.b16 %v439
    %v805 = vunpack.c.l.b16 %v440
    %v806 = vunpack.c.h.b16 %v440
    %v807 = vunpack.c.l.b16 %v441
    %v808 = vunpack.c.h.b16 %v441
    %v809 = vunpack.c.l.b16 %v442
    %v810 = vunpack.c.h.b16 %v442
    %v811 = vunpack.c.l.b16 %v443
    %v812 = vunpack.c.h.b16 %v443
    %v813 = vunpack.c.l.b16 %v444
    %v814 = vunpack.c.h.b16 %v444
    %v815 = vunpack.c.l.b16 %v445
    %v816 = vunpack.c.h.b16 %v445
    %v817 = vunpack.c.l.b16 %v446
    %v818 = vunpack.c.h.b16 %v446
    %v819 = vunpack.c.l.b16 %v447
    %v820 = vunpack.c.h.b16 %v447
    %v821 = vunpack.c.l.b16 %v448
    %v822 = vunpack.c.h.b16 %v448
    %v823 = vunpack.c.l.b16 %v449
    %v824 = vunpack.c.h.b16 %v449
    %v825 = vunpack.c.l.b16 %v450
    %v826 = vunpack.c.h.b16 %v450
    %v827 = vunpack.c.l.b16 %v451
    %v828 = vunpack.c.h.b16 %v451
    %v829 = vunpack.c.l.b16 %v452
    %v830 = vunpack.c.h.b16 %v452
    %v831 = vunpack.c.l.b16 %v453
    %v832 = vunpack.c.h.b16 %v453
    %v833 = vunpack.c.l.b16 %v454
    %v834 = vunpack.c.h.b16 %v454
    %v835 = vunpack.c.l.b16 %v455
    %v836 = vunpack.c.h.b16 %v455
    %v837 = vunpack.c.l.b16 %v456
    %v838 = vunpack.c.h.b16 %v456
    %v839 = vunpack.c.l.b16 %v457
    %v840 = vunpack.c.h.b16 %v457
    %v841 = vunpack.c.l.b16 %v458
    %v842 = vunpack.c.h.b16 %v458
    %v843 = vunpack.c.l.b16 %v459
    %v844 = vunpack.c.h.b16 %v459
    %v845 = vunpack.c.l.b16 %v460
    %v846 = vunpack.c.h.b16 %v460
    %v847 = vunpack.c.l.b16 %v461
    %v848 = vunpack.c.h.b16 %v461
    %v849 = vunpack.c.l.b16 %v462
    %v850 = vunpack.c.h.b16 %v462
    %v851 = vunpack.c.l.b16 %v463
    %v852 = vunpack.c.h.b16 %v463
    %v853 = vunpack.c.l.b16 %v464
    %v854 = vunpack.c.h.b16 %v464
    %v855 = vunpack.c.l.b16 %v465
    %v856 = vunpack.c.h.b16 %v465
    %v857 = vunpack.c.l.b16 %v466
    %v858 = vunpack.c.h.b16 %v466
    %v859 = vunpack.c.l.b16 %v467
    %v860 = vunpack.c.h.b16 %v467
    %v861 = vunpack.c.l.b16 %v468
    %v862 = vunpack.c.h.b16 %v468
    %v863 = vpack.c.b16 %v611, %v607
    %v864 = vpack.c.b16 %v612, %v608
    %v865 = vpack.c.b16 %v613, %v609
    %v866 = vpack.c.b16 %v614, %v610
    %v867 = vpack.c.b16 %v619, %v615
    %v868 = vpack.c.b16 %v620, %v616
    %v869 = vpack.c.b16 %v621, %v617
    %v870 = vpack.c.b16 %v622, %v618
    %v871 = vpack.c.b16 %v627, %v623
    %v872 = vpack.c.b16 %v628, %v624
    %v873 = vpack.c.b16 %v629, %v625
    %v874 = vpack.c.b16 %v630, %v626
    %v875 = vpack.c.b16 %v635, %v631
    %v876 = vpack.c.b16 %v636, %v632
    %v877 = vpack.c.b16 %v637, %v633
    %v878 = vpack.c.b16 %v638, %v634
    %v879 = vpack.c.b16 %v643, %v639
    %v880 = vpack.c.b16 %v644, %v640
    %v881 = vpack.c.b16 %v645, %v641
    %v882 = vpack.c.b16 %v646, %v642
    %v883 = vpack.c.b16 %v651, %v647
    %v884 = vpack.c.b16 %v652, %v648
    %v885 = vpack.c.b16 %v653, %v649
    %v886 = vpack.c.b16 %v654, %v650
    %v887 = vpack.c.b16 %v659, %v655
    %v888 = vpack.c.b16 %v660, %v656
    %v889 = vpack.c.b16 %v661, %v657
    %v890 = vpack.c.b16 %v662, %v658
    %v891 = vpack.c.b16 %v667, %v663
    %v892 = vpack.c.b16 %v668, %v664
    %v893 = vpack.c.b16 %v669, %v665
    %v894 = vpack.c.b16 %v670, %v666
    %v895 = vpack.c.b16 %v675, %v671
    %v896 = vpack.c.b16 %v676, %v672
    %v897 = vpack.c.b16 %v677, %v673
    %v898 = vpack.c.b16 %v678, %v674
    %v899 = vpack.c.b16 %v683, %v679
    %v900 = vpack.c.b16 %v684, %v680
    %v901 = vpack.c.b16 %v685, %v681
    %v902 = vpack.c.b16 %v686, %v682
    %v903 = vpack.c.b16 %v691, %v687
    %v904 = vpack.c.b16 %v692, %v688
    %v905 = vpack.c.b16 %v693, %v689
    %v906 = vpack.c.b16 %v694, %v690
    %v907 = vpack.c.b16 %v699, %v695
    %v908 = vpack.c.b16 %v700, %v696
    %v909 = vpack.c.b16 %v701, %v697
    %v910 = vpack.c.b16 %v702, %v698
    %v911 = vpack.c.b16 %v707, %v703
    %v912 = vpack.c.b16 %v708, %v704
    %v913 = vpack.c.b16 %v709, %v705
    %v914 = vpack.c.b16 %v710, %v706
    %v915 = vpack.c.b16 %v715, %v711
    %v916 = vpack.c.b16 %v716, %v712
    %v917 = vpack.c.b16 %v717, %v713
    %v918 = vpack.c.b16 %v718, %v714
    %v919 = vpack.c.b16 %v723, %v719
    %v920 = vpack.c.b16 %v724, %v720
    %v921 = vpack.c.b16 %v725, %v721
    %v922 = vpack.c.b16 %v726, %v722
    %v923 = vpack.c.b16 %v731, %v727
    %v924 = vpack.c.b16 %v732, %v728
    %v925 = vpack.c.b16 %v733, %v729
    %v926 = vpack.c.b16 %v734, %v730
    %v927 = vpack.c.b16 %v739, %v735
    %v928 = vpack.c.b16 %v740, %v736
    %v929 = vpack.c.b16 %v741, %v737
    %v930 = vpack.c.b16 %v742, %v738
    %v931 = vpack.c.b16 %v747, %v743
    %v932 = vpack.c.b16 %v748, %v744
    %v933 = vpack.c.b16 %v749, %v745
    %v934 = vpack.c.b16 %v750, %v746
    %v935 = vpack.c.b16 %v755, %v751
    %v936 = vpack.c.b16 %v756, %v752
    %v937 = vpack.c.b16 %v757, %v753
    %v938 = vpack.c.b16 %v758, %v754
    %v939 = vpack.c.b16 %v763, %v759
    %v940 = vpack.c.b16 %v764, %v760
    %v941 = vpack.c.b16 %v765, %v761
    %v942 = vpack.c.b16 %v766, %v762
    %v943 = vpack.c.b16 %v771, %v767
    %v944 = vpack.c.b16 %v772, %v768
    %v945 = vpack.c.b16 %v773, %v769
    %v946 = vpack.c.b16 %v774, %v770
    %v947 = vpack.c.b16 %v779, %v775
    %v948 = vpack.c.b16 %v780, %v776
    %v949 = vpack.c.b16 %v781, %v777
    %v950 = vpack.c.b16 %v782, %v778
    %v951 = vpack.c.b16 %v787, %v783
    %v952 = vpack.c.b16 %v788, %v784
    %v953 = vpack.c.b16 %v789, %v785
    %v954 = vpack.c.b16 %v790, %v786
    %v955 = vpack.c.b16 %v795, %v791
    %v956 = vpack.c.b16 %v796, %v792
    %v957 = vpack.c.b16 %v797, %v793
    %v958 = vpack.c.b16 %v798, %v794
    %v959 = vpack.c.b16 %v803, %v799
    %v960 = vpack.c.b16 %v804, %v800
    %v961 = vpack.c.b16 %v805, %v801
    %v962 = vpack.c.b16 %v806, %v802
    %v963 = vpack.c.b16 %v811, %v807
    %v964 = vpack.c.b16 %v812, %v808
    %v965 = vpack.c.b16 %v813, %v809
    %v966 = vpack.c.b16 %v814, %v810
    %v967 = vpack.c.b16 %v819, %v815
    %v968 = vpack.c.b16 %v820, %v816
    %v969 = vpack.c.b16 %v821, %v817
    %v970 = vpack.c.b16 %v822, %v818
    %v971 = vpack.c.b16 %v827, %v823
    %v972 = vpack.c.b16 %v828, %v824
    %v973 = vpack.c.b16 %v829, %v825
    %v974 = vpack.c.b16 %v830, %v826
    %v975 = vpack.c.b16 %v835, %v831
    %v976 = vpack.c.b16 %v836, %v832
    %v977 = vpack.c.b16 %v837, %v833
    %v978 = vpack.c.b16 %v838, %v834
    %v979 = vpack.c.b16 %v843, %v839
    %v980 = vpack.c.b16 %v844, %v840
    %v981 = vpack.c.b16 %v845, %v841
    %v982 = vpack.c.b16 %v846, %v842
    %v983 = vpack.c.b16 %v851, %v847
    %v984 = vpack.c.b16 %v852, %v848
    %v985 = vpack.c.b16 %v853, %v849
    %v986 = vpack.c.b16 %v854, %v850
    %v987 = vpack.c.b16 %v859, %v855
    %v988 = vpack.c.b16 %v860, %v856
    %v989 = vpack.c.b16 %v861, %v857
    %v990 = vpack.c.b16 %v862, %v858
    %1119 = vmatpush.bf16.msra.mxu0 %v891
    %1120 = vmatpush.bf16.msra.mxu0 %v887
    %1121 = vmatpush.bf16.msra.mxu0 %v883
    %1122 = vmatpush.bf16.msra.mxu0 %v879
    %1123 = vmatpush.bf16.msra.mxu0 %v875
    %1124 = vmatpush.bf16.msra.mxu0 %v871
    %1125 = vmatpush.bf16.msra.mxu0 %v867
    %1126 = vmatpush.bf16.msra.mxu0 %v863
    %1127 = vmatmul.bf16.gmra.mxu0 %v337
    %v1128 = vpop.f32.mrf.mxu0
    %v1129 = vadd.f32 %v471, %v1128
    %v1130 = vpop.f32.mrf.mxu0
    %1131 = vdwg.mxu0
    %1132 = vmatpush.bf16.msra.mxu0 %v923
    %1133 = vmatpush.bf16.msra.mxu0 %v919
    %1134 = vmatpush.bf16.msra.mxu0 %v915
    %1135 = vmatpush.bf16.msra.mxu0 %v911
    %1136 = vmatpush.bf16.msra.mxu0 %v907
    %1137 = vmatpush.bf16.msra.mxu0 %v903
    %1138 = vmatpush.bf16.msra.mxu0 %v899
    %1139 = vmatpush.bf16.msra.mxu0 %v895
    %1140 = vmatmul.bf16.gmra.mxu0 %v338
    %v1141 = vpop.f32.mrf.mxu0
    %v1142 = vadd.f32 %v1129, %v1141
    %v1143 = vpop.f32.mrf.mxu0
    %1144 = vdwg.mxu0
    %1145 = vmatpush.bf16.msra.mxu0 %v955
    %1146 = vmatpush.bf16.msra.mxu0 %v951
    %1147 = vmatpush.bf16.msra.mxu0 %v947
    %1148 = vmatpush.bf16.msra.mxu0 %v943
    %1149 = vmatpush.bf16.msra.mxu0 %v939
    %1150 = vmatpush.bf16.msra.mxu0 %v935
    %1151 = vmatpush.bf16.msra.mxu0 %v931
    %1152 = vmatpush.bf16.msra.mxu0 %v927
    %1153 = vmatmul.bf16.gmra.mxu0 %v339
    %v1154 = vpop.f32.mrf.mxu0
    %v1155 = vadd.f32 %v1142, %v1154
    %v1156 = vpop.f32.mrf.mxu0
    %1157 = vdwg.mxu0
    %1158 = vmatpush.bf16.msra.mxu0 %v987
    %1159 = vmatpush.bf16.msra.mxu0 %v983
    %1160 = vmatpush.bf16.msra.mxu0 %v979
    %1161 = vmatpush.bf16.msra.mxu0 %v975
    %1162 = vmatpush.bf16.msra.mxu0 %v971
    %1163 = vmatpush.bf16.msra.mxu0 %v967
    %1164 = vmatpush.bf16.msra.mxu0 %v963
    %1165 = vmatpush.bf16.msra.mxu0 %v959
    %1166 = vmatmul.bf16.gmra.mxu0 %v340
    %v1167 = vpop.f32.mrf.mxu0
    %v1168 = vadd.f32 %v1155, %v1167
    %v1169 = vpop.f32.mrf.mxu0
    %1170 = vdwg.mxu0
    %1171 = vmatpush.bf16.msra.mxu0 %v892
    %1172 = vmatpush.bf16.msra.mxu0 %v888
    %1173 = vmatpush.bf16.msra.mxu0 %v884
    %1174 = vmatpush.bf16.msra.mxu0 %v880
    %1175 = vmatpush.bf16.msra.mxu0 %v876
    %1176 = vmatpush.bf16.msra.mxu0 %v872
    %1177 = vmatpush.bf16.msra.mxu0 %v868
    %1178 = vmatpush.bf16.msra.mxu0 %v864
    %1179 = vmatmul.bf16.gmra.mxu0 %v337
    %v1180 = vpop.f32.mrf.mxu0
    %v1181 = vadd.f32 %v472, %v1180
    %v1182 = vpop.f32.mrf.mxu0
    %1183 = vdwg.mxu0
    %1184 = vmatpush.bf16.msra.mxu0 %v924
    %1185 = vmatpush.bf16.msra.mxu0 %v920
    %1186 = vmatpush.bf16.msra.mxu0 %v916
    %1187 = vmatpush.bf16.msra.mxu0 %v912
    %1188 = vmatpush.bf16.msra.mxu0 %v908
    %1189 = vmatpush.bf16.msra.mxu0 %v904
    %1190 = vmatpush.bf16.msra.mxu0 %v900
    %1191 = vmatpush.bf16.msra.mxu0 %v896
    %1192 = vmatmul.bf16.gmra.mxu0 %v338
    %v1193 = vpop.f32.mrf.mxu0
    %v1194 = vadd.f32 %v1181, %v1193
    %v1195 = vpop.f32.mrf.mxu0
    %1196 = vdwg.mxu0
    %1197 = vmatpush.bf16.msra.mxu0 %v956
    %1198 = vmatpush.bf16.msra.mxu0 %v952
    %1199 = vmatpush.bf16.msra.mxu0 %v948
    %1200 = vmatpush.bf16.msra.mxu0 %v944
    %1201 = vmatpush.bf16.msra.mxu0 %v940
    %1202 = vmatpush.bf16.msra.mxu0 %v936
    %1203 = vmatpush.bf16.msra.mxu0 %v932
    %1204 = vmatpush.bf16.msra.mxu0 %v928
    %1205 = vmatmul.bf16.gmra.mxu0 %v339
    %v1206 = vpop.f32.mrf.mxu0
    %v1207 = vadd.f32 %v1194, %v1206
    %v1208 = vpop.f32.mrf.mxu0
    %1209 = vdwg.mxu0
    %1210 = vmatpush.bf16.msra.mxu0 %v988
    %1211 = vmatpush.bf16.msra.mxu0 %v984
    %1212 = vmatpush.bf16.msra.mxu0 %v980
    %1213 = vmatpush.bf16.msra.mxu0 %v976
    %1214 = vmatpush.bf16.msra.mxu0 %v972
    %1215 = vmatpush.bf16.msra.mxu0 %v968
    %1216 = vmatpush.bf16.msra.mxu0 %v964
    %1217 = vmatpush.bf16.msra.mxu0 %v960
    %1218 = vmatmul.bf16.gmra.mxu0 %v340
    %v1219 = vpop.f32.mrf.mxu0
    %v1220 = vadd.f32 %v1207, %v1219
    %v1221 = vpop.f32.mrf.mxu0
    %1222 = vdwg.mxu0
    %1223 = vmatpush.bf16.msra.mxu0 %v893
    %1224 = vmatpush.bf16.msra.mxu0 %v889
    %1225 = vmatpush.bf16.msra.mxu0 %v885
    %1226 = vmatpush.bf16.msra.mxu0 %v881
    %1227 = vmatpush.bf16.msra.mxu0 %v877
    %1228 = vmatpush.bf16.msra.mxu0 %v873
    %1229 = vmatpush.bf16.msra.mxu0 %v869
    %1230 = vmatpush.bf16.msra.mxu0 %v865
    %1231 = vmatmul.bf16.gmra.mxu0 %v337
    %v1232 = vpop.f32.mrf.mxu0
    %v1233 = vadd.f32 %v473, %v1232
    %v1234 = vpop.f32.mrf.mxu0
    %1235 = vdwg.mxu0
    %1236 = vmatpush.bf16.msra.mxu0 %v925
    %1237 = vmatpush.bf16.msra.mxu0 %v921
    %1238 = vmatpush.bf16.msra.mxu0 %v917
    %1239 = vmatpush.bf16.msra.mxu0 %v913
    %1240 = vmatpush.bf16.msra.mxu0 %v909
    %1241 = vmatpush.bf16.msra.mxu0 %v905
    %1242 = vmatpush.bf16.msra.mxu0 %v901
    %1243 = vmatpush.bf16.msra.mxu0 %v897
    %1244 = vmatmul.bf16.gmra.mxu0 %v338
    %v1245 = vpop.f32.mrf.mxu0
    %v1246 = vadd.f32 %v1233, %v1245
    %v1247 = vpop.f32.mrf.mxu0
    %1248 = vdwg.mxu0
    %1249 = vmatpush.bf16.msra.mxu0 %v957
    %1250 = vmatpush.bf16.msra.mxu0 %v953
    %1251 = vmatpush.bf16.msra.mxu0 %v949
    %1252 = vmatpush.bf16.msra.mxu0 %v945
    %1253 = vmatpush.bf16.msra.mxu0 %v941
    %1254 = vmatpush.bf16.msra.mxu0 %v937
    %1255 = vmatpush.bf16.msra.mxu0 %v933
    %1256 = vmatpush.bf16.msra.mxu0 %v929
    %1257 = vmatmul.bf16.gmra.mxu0 %v339
    %v1258 = vpop.f32.mrf.mxu0
    %v1259 = vadd.f32 %v1246, %v1258
    %v1260 = vpop.f32.mrf.mxu0
    %1261 = vdwg.mxu0
    %1262 = vmatpush.bf16.msra.mxu0 %v989
    %1263 = vmatpush.bf16.msra.mxu0 %v985
    %1264 = vmatpush.bf16.msra.mxu0 %v981
    %1265 = vmatpush.bf16.msra.mxu0 %v977
    %1266 = vmatpush.bf16.msra.mxu0 %v973
    %1267 = vmatpush.bf16.msra.mxu0 %v969
    %1268 = vmatpush.bf16.msra.mxu0 %v965
    %1269 = vmatpush.bf16.msra.mxu0 %v961
    %1270 = vmatmul.bf16.gmra.mxu0 %v340
    %v1271 = vpop.f32.mrf.mxu0
    %v1272 = vadd.f32 %v1259, %v1271
    %v1273 = vpop.f32.mrf.mxu0
    %1274 = vdwg.mxu0
    %1275 = vmatpush.bf16.msra.mxu0 %v894
    %1276 = vmatpush.bf16.msra.mxu0 %v890
    %1277 = vmatpush.bf16.msra.mxu0 %v886
    %1278 = vmatpush.bf16.msra.mxu0 %v882
    %1279 = vmatpush.bf16.msra.mxu0 %v878
    %1280 = vmatpush.bf16.msra.mxu0 %v874
    %1281 = vmatpush.bf16.msra.mxu0 %v870
    %1282 = vmatpush.bf16.msra.mxu0 %v866
    %1283 = vmatmul.bf16.gmra.mxu0 %v337
    %v1284 = vpop.f32.mrf.mxu0
    %v1285 = vadd.f32 %v474, %v1284
    %v1286 = vpop.f32.mrf.mxu0
    %1287 = vdwg.mxu0
    %1288 = vmatpush.bf16.msra.mxu0 %v926
    %1289 = vmatpush.bf16.msra.mxu0 %v922
    %1290 = vmatpush.bf16.msra.mxu0 %v918
    %1291 = vmatpush.bf16.msra.mxu0 %v914
    %1292 = vmatpush.bf16.msra.mxu0 %v910
    %1293 = vmatpush.bf16.msra.mxu0 %v906
    %1294 = vmatpush.bf16.msra.mxu0 %v902
    %1295 = vmatpush.bf16.msra.mxu0 %v898
    %1296 = vmatmul.bf16.gmra.mxu0 %v338
    %v1297 = vpop.f32.mrf.mxu0
    %v1298 = vadd.f32 %v1285, %v1297
    %v1299 = vpop.f32.mrf.mxu0
    %1300 = vdwg.mxu0
    %1301 = vmatpush.bf16.msra.mxu0 %v958
    %1302 = vmatpush.bf16.msra.mxu0 %v954
    %1303 = vmatpush.bf16.msra.mxu0 %v950
    %1304 = vmatpush.bf16.msra.mxu0 %v946
    %1305 = vmatpush.bf16.msra.mxu0 %v942
    %1306 = vmatpush.bf16.msra.mxu0 %v938
    %1307 = vmatpush.bf16.msra.mxu0 %v934
    %1308 = vmatpush.bf16.msra.mxu0 %v930
    %1309 = vmatmul.bf16.gmra.mxu0 %v339
    %v1310 = vpop.f32.mrf.mxu0
    %v1311 = vadd.f32 %v1298, %v1310
    %v1312 = vpop.f32.mrf.mxu0
    %1313 = vdwg.mxu0
    %1314 = vmatpush.bf16.msra.mxu0 %v990
    %1315 = vmatpush.bf16.msra.mxu0 %v986
    %1316 = vmatpush.bf16.msra.mxu0 %v982
    %1317 = vmatpush.bf16.msra.mxu0 %v978
    %1318 = vmatpush.bf16.msra.mxu0 %v974
    %1319 = vmatpush.bf16.msra.mxu0 %v970
    %1320 = vmatpush.bf16.msra.mxu0 %v966
    %1321 = vmatpush.bf16.msra.mxu0 %v962
    %1322 = vmatmul.bf16.gmra.mxu0 %v340
    %v1323 = vpop.f32.mrf.mxu0
    %v1324 = vadd.f32 %v1311, %v1323
    %v1325 = vpop.f32.mrf.mxu0
    %1326 = vdwg.mxu0
    %vm1327 = vcmp.ge.f32.partialorder %v1168, 0.0
    %vm1328 = vcmp.ge.f32.partialorder %v1220, 0.0
    %vm1329 = vcmp.ge.f32.partialorder %v1272, 0.0
    %vm1330 = vcmp.ge.f32.partialorder %v1324, 0.0
    %v1331 = vmul.f32 %v1168, 0.2
    %v1332 = vmul.f32 %v1220, 0.2
    %v1333 = vmul.f32 %v1272, 0.2
    %v1334 = vmul.f32 %v1324, 0.2
    %v1335 = vsel %vm1327, %v1168, %v1331
    %v1336 = vsel %vm1328, %v1220, %v1332
    %v1337 = vsel %vm1329, %v1272, %v1333
    %v1338 = vsel %vm1330, %v1324, %v1334
    %v1339 = vpack.c.bf16 %v1335, %v1335
    %v1340 = vpack.c.bf16 %v1336, %v1336
    %v1341 = vpack.c.bf16 %v1337, %v1337
    %v1342 = vpack.c.bf16 %v1338, %v1338
    %v1343 = vld [vmem:[%s5] sm:$0xf]
    %v1344 = vld [vmem:[%s5 + $0x4] sm:$0xf]
    %v1345 = vld [vmem:[%s5 + $0x8] sm:$0xf]
    %v1346 = vld [vmem:[%s5 + $0xc] sm:$0xf]
    %v1347 = vld [vmem:[%s5 + $0x10] sm:$0xf]
    %v1348 = vld [vmem:[%s5 + $0x14] sm:$0xf]
    %v1349 = vld [vmem:[%s5 + $0x18] sm:$0xf]
    %v1350 = vld [vmem:[%s5 + $0x1c] sm:$0xf]
    %v1351 = vld [vmem:[%s5 + $0x20] sm:$0xf]
    %v1352 = vld [vmem:[%s5 + $0x24] sm:$0xf]
    %v1353 = vld [vmem:[%s5 + $0x28] sm:$0xf]
    %v1354 = vld [vmem:[%s5 + $0x2c] sm:$0xf]
    %v1355 = vld [vmem:[%s5 + $0x30] sm:$0xf]
    %v1356 = vld [vmem:[%s5 + $0x34] sm:$0xf]
    %v1357 = vld [vmem:[%s5 + $0x38] sm:$0xf]
    %v1358 = vld [vmem:[%s5 + $0x3c] sm:$0xf]
    %v1359 = vld [vmem:[%s5 + $0x40] sm:$0xf]
    %v1360 = vld [vmem:[%s5 + $0x44] sm:$0xf]
    %v1361 = vld [vmem:[%s5 + $0x48] sm:$0xf]
    %v1362 = vld [vmem:[%s5 + $0x4c] sm:$0xf]
    %v1363 = vld [vmem:[%s5 + $0x50] sm:$0xf]
    %v1364 = vld [vmem:[%s5 + $0x54] sm:$0xf]
    %v1365 = vld [vmem:[%s5 + $0x58] sm:$0xf]
    %v1366 = vld [vmem:[%s5 + $0x5c] sm:$0xf]
    %v1367 = vld [vmem:[%s5 + $0x60] sm:$0xf]
    %v1368 = vld [vmem:[%s5 + $0x64] sm:$0xf]
    %v1369 = vld [vmem:[%s5 + $0x68] sm:$0xf]
    %v1370 = vld [vmem:[%s5 + $0x6c] sm:$0xf]
    %v1371 = vld [vmem:[%s5 + $0x70] sm:$0xf]
    %v1372 = vld [vmem:[%s5 + $0x74] sm:$0xf]
    %v1373 = vld [vmem:[%s5 + $0x78] sm:$0xf]
    %v1374 = vld [vmem:[%s5 + $0x7c] sm:$0xf]
    %v1375 = vld [vmem:[%s5 + $0x80] sm:$0xf]
    %v1376 = vld [vmem:[%s5 + $0x84] sm:$0xf]
    %v1377 = vld [vmem:[%s5 + $0x88] sm:$0xf]
    %v1378 = vld [vmem:[%s5 + $0x8c] sm:$0xf]
    %v1379 = vld [vmem:[%s5 + $0x90] sm:$0xf]
    %v1380 = vld [vmem:[%s5 + $0x94] sm:$0xf]
    %v1381 = vld [vmem:[%s5 + $0x98] sm:$0xf]
    %v1382 = vld [vmem:[%s5 + $0x9c] sm:$0xf]
    %v1383 = vld [vmem:[%s5 + $0xa0] sm:$0xf]
    %v1384 = vld [vmem:[%s5 + $0xa4] sm:$0xf]
    %v1385 = vld [vmem:[%s5 + $0xa8] sm:$0xf]
    %v1386 = vld [vmem:[%s5 + $0xac] sm:$0xf]
    %v1387 = vld [vmem:[%s5 + $0xb0] sm:$0xf]
    %v1388 = vld [vmem:[%s5 + $0xb4] sm:$0xf]
    %v1389 = vld [vmem:[%s5 + $0xb8] sm:$0xf]
    %v1390 = vld [vmem:[%s5 + $0xbc] sm:$0xf]
    %v1391 = vld [vmem:[%s5 + $0xc0] sm:$0xf]
    %v1392 = vld [vmem:[%s5 + $0xc4] sm:$0xf]
    %v1393 = vld [vmem:[%s5 + $0xc8] sm:$0xf]
    %v1394 = vld [vmem:[%s5 + $0xcc] sm:$0xf]
    %v1395 = vld [vmem:[%s5 + $0xd0] sm:$0xf]
    %v1396 = vld [vmem:[%s5 + $0xd4] sm:$0xf]
    %v1397 = vld [vmem:[%s5 + $0xd8] sm:$0xf]
    %v1398 = vld [vmem:[%s5 + $0xdc] sm:$0xf]
    %v1399 = vld [vmem:[%s5 + $0xe0] sm:$0xf]
    %v1400 = vld [vmem:[%s5 + $0xe4] sm:$0xf]
    %v1401 = vld [vmem:[%s5 + $0xe8] sm:$0xf]
    %v1402 = vld [vmem:[%s5 + $0xec] sm:$0xf]
    %v1403 = vld [vmem:[%s5 + $0xf0] sm:$0xf]
    %v1404 = vld [vmem:[%s5 + $0xf4] sm:$0xf]
    %v1405 = vld [vmem:[%s5 + $0xf8] sm:$0xf]
    %v1406 = vld [vmem:[%s5 + $0xfc] sm:$0xf]
    %v1407 = vld [vmem:[%s6] sm:$0x1]
    %v1409 = vperm.slane %v1407, 0
    %v1475 = vunpack.c.l.b16 %v1343
    %v1476 = vunpack.c.l.b16 %v1344
    %v1477 = vunpack.c.l.b16 %v1345
    %v1478 = vunpack.c.l.b16 %v1346
    %v1479 = vunpack.c.l.b16 %v1347
    %v1480 = vunpack.c.l.b16 %v1348
    %v1481 = vunpack.c.l.b16 %v1349
    %v1482 = vunpack.c.l.b16 %v1350
    %v1483 = vunpack.c.l.b16 %v1351
    %v1484 = vunpack.c.l.b16 %v1352
    %v1485 = vunpack.c.l.b16 %v1353
    %v1486 = vunpack.c.l.b16 %v1354
    %v1487 = vunpack.c.l.b16 %v1355
    %v1488 = vunpack.c.l.b16 %v1356
    %v1489 = vunpack.c.l.b16 %v1357
    %v1490 = vunpack.c.l.b16 %v1358
    %v1491 = vunpack.c.l.b16 %v1359
    %v1492 = vunpack.c.l.b16 %v1360
    %v1493 = vunpack.c.l.b16 %v1361
    %v1494 = vunpack.c.l.b16 %v1362
    %v1495 = vunpack.c.l.b16 %v1363
    %v1496 = vunpack.c.l.b16 %v1364
    %v1497 = vunpack.c.l.b16 %v1365
    %v1498 = vunpack.c.l.b16 %v1366
    %v1499 = vunpack.c.l.b16 %v1367
    %v1500 = vunpack.c.l.b16 %v1368
    %v1501 = vunpack.c.l.b16 %v1369
    %v1502 = vunpack.c.l.b16 %v1370
    %v1503 = vunpack.c.l.b16 %v1371
    %v1504 = vunpack.c.l.b16 %v1372
    %v1505 = vunpack.c.l.b16 %v1373
    %v1506 = vunpack.c.l.b16 %v1374
    %v1507 = vunpack.c.l.b16 %v1375
    %v1508 = vunpack.c.l.b16 %v1376
    %v1509 = vunpack.c.l.b16 %v1377
    %v1510 = vunpack.c.l.b16 %v1378
    %v1511 = vunpack.c.l.b16 %v1379
    %v1512 = vunpack.c.l.b16 %v1380
    %v1513 = vunpack.c.l.b16 %v1381
    %v1514 = vunpack.c.l.b16 %v1382
    %v1515 = vunpack.c.l.b16 %v1383
    %v1516 = vunpack.c.l.b16 %v1384
    %v1517 = vunpack.c.l.b16 %v1385
    %v1518 = vunpack.c.l.b16 %v1386
    %v1519 = vunpack.c.l.b16 %v1387
    %v1520 = vunpack.c.l.b16 %v1388
    %v1521 = vunpack.c.l.b16 %v1389
    %v1522 = vunpack.c.l.b16 %v1390
    %v1523 = vunpack.c.l.b16 %v1391
    %v1524 = vunpack.c.l.b16 %v1392
    %v1525 = vunpack.c.l.b16 %v1393
    %v1526 = vunpack.c.l.b16 %v1394
    %v1527 = vunpack.c.l.b16 %v1395
    %v1528 = vunpack.c.l.b16 %v1396
    %v1529 = vunpack.c.l.b16 %v1397
    %v1530 = vunpack.c.l.b16 %v1398
    %v1531 = vunpack.c.l.b16 %v1399
    %v1532 = vunpack.c.l.b16 %v1400
    %v1533 = vunpack.c.l.b16 %v1401
    %v1534 = vunpack.c.l.b16 %v1402
    %v1535 = vunpack.c.l.b16 %v1403
    %v1536 = vunpack.c.l.b16 %v1404
    %v1537 = vunpack.c.l.b16 %v1405
    %v1538 = vunpack.c.l.b16 %v1406
    %v1539 = vpack.c.b16 %v1476, %v1475
    %v1540 = vpack.c.b16 %v1478, %v1477
    %v1541 = vpack.c.b16 %v1480, %v1479
    %v1542 = vpack.c.b16 %v1482, %v1481
    %v1543 = vpack.c.b16 %v1484, %v1483
    %v1544 = vpack.c.b16 %v1486, %v1485
    %v1545 = vpack.c.b16 %v1488, %v1487
    %v1546 = vpack.c.b16 %v1490, %v1489
    %v1547 = vpack.c.b16 %v1492, %v1491
    %v1548 = vpack.c.b16 %v1494, %v1493
    %v1549 = vpack.c.b16 %v1496, %v1495
    %v1550 = vpack.c.b16 %v1498, %v1497
    %v1551 = vpack.c.b16 %v1500, %v1499
    %v1552 = vpack.c.b16 %v1502, %v1501
    %v1553 = vpack.c.b16 %v1504, %v1503
    %v1554 = vpack.c.b16 %v1506, %v1505
    %v1555 = vpack.c.b16 %v1508, %v1507
    %v1556 = vpack.c.b16 %v1510, %v1509
    %v1557 = vpack.c.b16 %v1512, %v1511
    %v1558 = vpack.c.b16 %v1514, %v1513
    %v1559 = vpack.c.b16 %v1516, %v1515
    %v1560 = vpack.c.b16 %v1518, %v1517
    %v1561 = vpack.c.b16 %v1520, %v1519
    %v1562 = vpack.c.b16 %v1522, %v1521
    %v1563 = vpack.c.b16 %v1524, %v1523
    %v1564 = vpack.c.b16 %v1526, %v1525
    %v1565 = vpack.c.b16 %v1528, %v1527
    %v1566 = vpack.c.b16 %v1530, %v1529
    %v1567 = vpack.c.b16 %v1532, %v1531
    %v1568 = vpack.c.b16 %v1534, %v1533
    %v1569 = vpack.c.b16 %v1536, %v1535
    %v1570 = vpack.c.b16 %v1538, %v1537
    %1603 = vmatpush.bf16.msra.mxu0 %v1546
    %1604 = vmatpush.bf16.msra.mxu0 %v1545
    %1605 = vmatpush.bf16.msra.mxu0 %v1544
    %1606 = vmatpush.bf16.msra.mxu0 %v1543
    %1607 = vmatpush.bf16.msra.mxu0 %v1542
    %1608 = vmatpush.bf16.msra.mxu0 %v1541
    %1609 = vmatpush.bf16.msra.mxu0 %v1540
    %1610 = vmatpush.bf16.msra.mxu0 %v1539
    %1611 = vmatmul.bf16.gmra.mxu0 %v1339
    %v1612 = vpop.f32.mrf.mxu0
    %v1613 = vadd.f32 %v1409, %v1612
    %v1614 = vpop.f32.mrf.mxu0
    %1615 = vdwg.mxu0
    %1616 = vmatpush.bf16.msra.mxu0 %v1554
    %1617 = vmatpush.bf16.msra.mxu0 %v1553
    %1618 = vmatpush.bf16.msra.mxu0 %v1552
    %1619 = vmatpush.bf16.msra.mxu0 %v1551
    %1620 = vmatpush.bf16.msra.mxu0 %v1550
    %1621 = vmatpush.bf16.msra.mxu0 %v1549
    %1622 = vmatpush.bf16.msra.mxu0 %v1548
    %1623 = vmatpush.bf16.msra.mxu0 %v1547
    %1624 = vmatmul.bf16.gmra.mxu0 %v1340
    %v1625 = vpop.f32.mrf.mxu0
    %v1626 = vadd.f32 %v1613, %v1625
    %v1627 = vpop.f32.mrf.mxu0
    %1628 = vdwg.mxu0
    %1629 = vmatpush.bf16.msra.mxu0 %v1562
    %1630 = vmatpush.bf16.msra.mxu0 %v1561
    %1631 = vmatpush.bf16.msra.mxu0 %v1560
    %1632 = vmatpush.bf16.msra.mxu0 %v1559
    %1633 = vmatpush.bf16.msra.mxu0 %v1558
    %1634 = vmatpush.bf16.msra.mxu0 %v1557
    %1635 = vmatpush.bf16.msra.mxu0 %v1556
    %1636 = vmatpush.bf16.msra.mxu0 %v1555
    %1637 = vmatmul.bf16.gmra.mxu0 %v1341
    %v1638 = vpop.f32.mrf.mxu0
    %v1639 = vadd.f32 %v1626, %v1638
    %v1640 = vpop.f32.mrf.mxu0
    %1641 = vdwg.mxu0
    %1642 = vmatpush.bf16.msra.mxu0 %v1570
    %1643 = vmatpush.bf16.msra.mxu0 %v1569
    %1644 = vmatpush.bf16.msra.mxu0 %v1568
    %1645 = vmatpush.bf16.msra.mxu0 %v1567
    %1646 = vmatpush.bf16.msra.mxu0 %v1566
    %1647 = vmatpush.bf16.msra.mxu0 %v1565
    %1648 = vmatpush.bf16.msra.mxu0 %v1564
    %1649 = vmatpush.bf16.msra.mxu0 %v1563
    %1650 = vmatmul.bf16.gmra.mxu0 %v1342
    %v1651 = vpop.f32.mrf.mxu0
    %v1652 = vadd.f32 %v1639, %v1651
    %v1653 = vpop.f32.mrf.mxu0
    %1654 = vdwg.mxu0
    %v1655 = vxor.u32 %v1652, 2147483648
    %v1656 = vmul.f32 %v1655, 1.442695
    %v1657 = vpow.pop %v1656
    %v1658 = vadd.f32 %v1657, 1.0
    %v1659 = vrcp.pop %v1658
    %v1660 = vmul.f32 %v1658, %v1659
    %v1661 = vsub.f32 1.0, %v1660
    %v1662 = vmul.f32 %v1659, %v1661
    %v1663 = vadd.f32 %v1659, %v1662
    %vm1664 = vweird.f32 %v1658
    %vm1665 = vweird.f32 %v1659
    %vm1666 = vmor %vm1664, %vm1665
    %v1667 = vsel %vm1666, %v1659, %v1663
    %v1668 = vand.u32 2147483647, %v1658
    %vm1669 = vcmp.eq.f32.partialorder %v1668, 8.507059e+37
    %v1670 = vand.u32 %v1658, 2147483648
    %v1671 = vor.u32 1.1754944e-38, %v1670
    %v1672 = vsel %vm1669, %v1671, %v1667
    %v1673 = vmul.f32 1.0, %v1672
    %vm1674 = vcmask 31744
    %1675 = vst.msk [vmem:[%s7] sm:$0xff] %vm1674, %v1673
    // Predicated region
    $region42: #{tpu_custom_call.1} parent=1 // pred_check
      _
    $region43: #{tpu_custom_call.1} parent=1 // pred_check_branch
      %1677 = sbr.rel (0) target = $region45
    $region44: #{tpu_custom_call.1} parent=1 // pred_region
      _
    $region45: #{tpu_custom_call.1} parent=1 // pred_fallthru
      _
    // Predicated region
    $region46: #{tpu_custom_call.1} parent=1 // pred_check
      _
    $region47: #{tpu_custom_call.1} parent=1 // pred_check_branch
      %1679 = sbr.rel (0) target = $region49
    $region48: #{tpu_custom_call.1} parent=1 // pred_region
      _
    $region49: #{tpu_custom_call.1} parent=1 // pred_fallthru
      _
    %1680 = vsyncpa [#allocation3], 1
    %1681 = vsyncpa [#allocation5], 1

</llo_original>
